<compile_context>
chip_gen: v7x
topology: tpu7x:2x2x1
jax: 0.10.0
libtpu: 0.0.40
codegen_flags: <defaults>
</compile_context>

<pallas_src>
import math
import functools

import jax
import jax.numpy as jnp
from jax.experimental import pallas as pl
from jax.experimental.pallas import tpu as pltpu


def _sinusoidal_kernel(t_ref, f_ref, o_ref, *, half, K, r):
    # t_ref: (TBf, r*K)          f32  folded timesteps (r original rows / kernel row)
    # f_ref: (1, half)           f32  frequencies
    # o_ref: (TBf, r*2*K*half)   f32  [cos block | sin block] per original row
    t = t_ref[...]                                   # (TBf, r*K)
    f = f_ref[...]                                   # (1, half)
    out_cols = 2 * K * half
    # Static fully-unrolled loops (r*K is small by construction).  Each step is
    # a 2-D broadcast multiply + cos/sin on the EUP, stored straight into the
    # output tile (no concatenate, no extra VMEM pass).
    for j in range(r):
        base = j * out_cols
        for k in range(K):
            col = j * K + k
            args = t[:, col:col + 1] * f             # (TBf, half)
            o_ref[:, base + k * half:
                     base + (k + 1) * half] = jnp.cos(args)
            o_ref[:, base + K * half + k * half:
                     base + K * half + (k + 1) * half] = jnp.sin(args)


class SinusoidalEncoderPallas:
    """JAX/Pallas port of the PyTorch SinusoidalEncoder forward pass."""

    def __init__(self, data=None, dim=None, max_period=10000, dim_scale=0.25):
        assert data is not None or dim is not None
        if dim is None:
            dim = int(len(data) ** dim_scale)
        self.dim = int(dim)
        self.half = self.dim // 2
        self.res = self.dim % 2
        assert self.half >= 1, "dim must be >= 2"
        # Deterministic, non-trainable parameter (same formula as nn.Parameter).
        self.freqs = jnp.exp(
            -math.log(max_period)
            * jnp.arange(0, self.half, dtype=jnp.float32)
            / float(self.half)
        )                                             # (half,)

    def __call__(self, timesteps):
        timesteps = jnp.asarray(timesteps, dtype=jnp.float32)
        B = int(timesteps.shape[0])
        K = 1
        for s in timesteps.shape[1:]:
            K *= int(s)
        half, res = self.half, self.res
        out_cols = 2 * K * half                       # kernel output width (no res)

        # Fold r consecutive batch rows into one kernel row so the output
        # block's lane dim is a multiple of 128 (dense stores / dense writeback).
        r = 128 // math.gcd(out_cols, 128)
        if out_cols % 128 == 0 or B % r != 0 or r * K > 64:
            r = 1
        Bf = B // r

        t2d = timesteps.reshape(Bf, r * K)            # row-major view (free reshape)
        f2d = self.freqs.reshape(1, half)

        # Row tile: whole folded batch if small, else 1024-row (multiple of 8)
        # tiles so the grid pipelines DMA against compute.  Tiles stay well
        # inside the default scoped-VMEM budget on v5e/v6e/v7x.
        tbf = Bf if Bf <= 1024 else 1024
        grid = (pl.cdiv(Bf, tbf),)

        kernel = functools.partial(_sinusoidal_kernel, half=half, K=K, r=r)

        cost = pl.CostEstimate(
            flops=B * K * half,
            transcendentals=2 * B * K * half,
            bytes_accessed=4 * (B * K + half + B * out_cols),
        )

        out = pl.pallas_call(
            kernel,
            out_shape=jax.ShapeDtypeStruct((Bf, r * out_cols), jnp.float32),
            grid=grid,
            in_specs=[
                pl.BlockSpec((tbf, r * K), lambda i: (i, 0)),
                pl.BlockSpec((1, half), lambda i: (0, 0)),
            ],
            out_specs=pl.BlockSpec((tbf, r * out_cols), lambda i: (i, 0)),
            compiler_params=pltpu.CompilerParams(
                dimension_semantics=("parallel",),
            ),
            cost_estimate=cost,
        )(t2d, f2d)

        out = out.reshape(B, out_cols)                # unfold (row-major view, free)
        if res:
            # Odd-dim tail column of zeros, padded in the wrapper (keeps the
            # kernel output lane-friendly and matches torch semantics).
            out = jnp.concatenate(
                [out, jnp.zeros((B, res), dtype=out.dtype)], axis=-1)
        return out


def _reference(timesteps, freqs, res):
    # Pure-JAX reference mirroring the torch forward.
    t = jnp.asarray(timesteps, dtype=jnp.float32)
    args = (t[..., None] * freqs).reshape(t.shape[0], -1)
    emb = jnp.concatenate([jnp.cos(args), jnp.sin(args)], axis=-1)
    if res:
        emb = jnp.concatenate(
            [emb, jnp.zeros((t.shape[0], res), emb.dtype)], axis=-1)
    return emb


if __name__ == "__main__":
    key = jax.random.PRNGKey(0)

    # Primary case: 1-D timesteps, even dim (folded r=4 -> lane-dense output).
    B, dim = 8, 32                                    # half = 16, res = 0
    timesteps = jax.random.uniform(
        key, (B,), dtype=jnp.float32, minval=0.0, maxval=100.0)
    enc = SinusoidalEncoderPallas(dim=dim)
    out = jax.block_until_ready(enc(timesteps))
    ref = _reference(timesteps, enc.freqs, enc.res)
    assert out.shape == (B, 2 * enc.half + enc.res), out.shape
    assert jnp.allclose(out, ref, atol=1e-5, rtol=1e-5), "mismatch (dim=32)"

    # Odd dim (res = 1, padded in the wrapper).
    enc_odd = SinusoidalEncoderPallas(dim=33)         # half = 16, res = 1
    out_odd = jax.block_until_ready(enc_odd(timesteps))
    ref_odd = _reference(timesteps, enc_odd.freqs, enc_odd.res)
    assert out_odd.shape == (B, 2 * enc_odd.half + 1), out_odd.shape
    assert jnp.allclose(out_odd, ref_odd, atol=1e-5, rtol=1e-5), "mismatch (dim=33)"

    # Multi-dim timesteps (K > 1) exercising the unfolded (r=1) fallback path.
    t_md = jax.random.uniform(
        jax.random.PRNGKey(1), (B, 2), dtype=jnp.float32, minval=0.0, maxval=50.0)
    enc_md = SinusoidalEncoderPallas(dim=10)          # half = 5, res = 0
    out_md = jax.block_until_ready(enc_md(t_md))
    ref_md = _reference(t_md, enc_md.freqs, enc_md.res)
    assert out_md.shape == (B, 2 * 2 * enc_md.half), out_md.shape
    assert jnp.allclose(out_md, ref_md, atol=1e-5, rtol=1e-5), "mismatch (K=2)"

    print("KERNEL_OK")
</pallas_src>

<mosaic_0001>
module attributes {stable_mosaic.version = 11 : i64} {
  func.func @_sinusoidal_kernel(%arg0: i32, %arg1: memref<2x4xf32, #tpu.memory_space<vmem>>, %arg2: memref<1x16xf32, #tpu.memory_space<vmem>>, %arg3: memref<2x128xf32, #tpu.memory_space<vmem>>) attributes {dimension_semantics = [#tpu.dimension_semantics<parallel>], iteration_bounds = array<i64: 1>, scalar_prefetch = 0 : i64, scratch_operands = 0 : i64, tpu.core_type = #tpu.core_type<tc>, window_params = [{transform_indices = @transform_0, window_bounds = array<i64: 2, 4>}, {pipeline_mode = #tpu.pipeline_mode<synchronous>, transform_indices = @transform_1, window_bounds = array<i64: 1, 16>}, {transform_indices = @transform_2, window_bounds = array<i64: 2, 128>}]} {
    %c0 = arith.constant 0 : index
    %c0_0 = arith.constant 0 : index
    %0 = vector.load %arg1[%c0, %c0_0] : memref<2x4xf32, #tpu.memory_space<vmem>>, vector<2x4xf32>
    %c0_1 = arith.constant 0 : index
    %c0_2 = arith.constant 0 : index
    %1 = vector.load %arg2[%c0_1, %c0_2] : memref<1x16xf32, #tpu.memory_space<vmem>>, vector<1x16xf32>
    %2 = vector.extract_strided_slice %0 {offsets = [0, 0], sizes = [2, 1], strides = [1, 1]} : vector<2x4xf32> to vector<2x1xf32>
    %3 = vector.broadcast %2 : vector<2x1xf32> to vector<2x16xf32>
    %4 = vector.broadcast %1 : vector<1x16xf32> to vector<2x16xf32>
    %5 = arith.mulf %3, %4 : vector<2x16xf32>
    %6 = math.cos %5 : vector<2x16xf32>
    %c0_3 = arith.constant 0 : index
    %c0_4 = arith.constant 0 : index
    %7 = vector.load %arg3[%c0_3, %c0_4] : memref<2x128xf32, #tpu.memory_space<vmem>>, vector<2x16xf32>
    tpu.vector_store %arg3[%c0_3, %c0_4], %6 {strides = array<i32>} : memref<2x128xf32, #tpu.memory_space<vmem>>, vector<2x16xf32>,
    %8 = math.sin %5 : vector<2x16xf32>
    %c0_5 = arith.constant 0 : index
    %c16 = arith.constant 16 : index
    %9 = vector.load %arg3[%c0_5, %c16] : memref<2x128xf32, #tpu.memory_space<vmem>>, vector<2x16xf32>
    tpu.vector_store %arg3[%c0_5, %c16], %8 {strides = array<i32>} : memref<2x128xf32, #tpu.memory_space<vmem>>, vector<2x16xf32>,
    %10 = vector.extract_strided_slice %0 {offsets = [0, 1], sizes = [2, 1], strides = [1, 1]} : vector<2x4xf32> to vector<2x1xf32>
    %11 = vector.broadcast %10 : vector<2x1xf32> to vector<2x16xf32>
    %12 = vector.broadcast %1 : vector<1x16xf32> to vector<2x16xf32>
    %13 = arith.mulf %11, %12 : vector<2x16xf32>
    %14 = math.cos %13 : vector<2x16xf32>
    %c0_6 = arith.constant 0 : index
    %c32 = arith.constant 32 : index
    %15 = vector.load %arg3[%c0_6, %c32] : memref<2x128xf32, #tpu.memory_space<vmem>>, vector<2x16xf32>
    tpu.vector_store %arg3[%c0_6, %c32], %14 {strides = array<i32>} : memref<2x128xf32, #tpu.memory_space<vmem>>, vector<2x16xf32>,
    %16 = math.sin %13 : vector<2x16xf32>
    %c0_7 = arith.constant 0 : index
    %c48 = arith.constant 48 : index
    %17 = vector.load %arg3[%c0_7, %c48] : memref<2x128xf32, #tpu.memory_space<vmem>>, vector<2x16xf32>
    tpu.vector_store %arg3[%c0_7, %c48], %16 {strides = array<i32>} : memref<2x128xf32, #tpu.memory_space<vmem>>, vector<2x16xf32>,
    %18 = vector.extract_strided_slice %0 {offsets = [0, 2], sizes = [2, 1], strides = [1, 1]} : vector<2x4xf32> to vector<2x1xf32>
    %19 = vector.broadcast %18 : vector<2x1xf32> to vector<2x16xf32>
    %20 = vector.broadcast %1 : vector<1x16xf32> to vector<2x16xf32>
    %21 = arith.mulf %19, %20 : vector<2x16xf32>
    %22 = math.cos %21 : vector<2x16xf32>
    %c0_8 = arith.constant 0 : index
    %c64 = arith.constant 64 : index
    %23 = vector.load %arg3[%c0_8, %c64] : memref<2x128xf32, #tpu.memory_space<vmem>>, vector<2x16xf32>
    tpu.vector_store %arg3[%c0_8, %c64], %22 {strides = array<i32>} : memref<2x128xf32, #tpu.memory_space<vmem>>, vector<2x16xf32>,
    %24 = math.sin %21 : vector<2x16xf32>
    %c0_9 = arith.constant 0 : index
    %c80 = arith.constant 80 : index
    %25 = vector.load %arg3[%c0_9, %c80] : memref<2x128xf32, #tpu.memory_space<vmem>>, vector<2x16xf32>
    tpu.vector_store %arg3[%c0_9, %c80], %24 {strides = array<i32>} : memref<2x128xf32, #tpu.memory_space<vmem>>, vector<2x16xf32>,
    %26 = vector.extract_strided_slice %0 {offsets = [0, 3], sizes = [2, 1], strides = [1, 1]} : vector<2x4xf32> to vector<2x1xf32>
    %27 = vector.broadcast %26 : vector<2x1xf32> to vector<2x16xf32>
    %28 = vector.broadcast %1 : vector<1x16xf32> to vector<2x16xf32>
    %29 = arith.mulf %27, %28 : vector<2x16xf32>
    %30 = math.cos %29 : vector<2x16xf32>
    %c0_10 = arith.constant 0 : index
    %c96 = arith.constant 96 : index
    %31 = vector.load %arg3[%c0_10, %c96] : memref<2x128xf32, #tpu.memory_space<vmem>>, vector<2x16xf32>
    tpu.vector_store %arg3[%c0_10, %c96], %30 {strides = array<i32>} : memref<2x128xf32, #tpu.memory_space<vmem>>, vector<2x16xf32>,
    %32 = math.sin %29 : vector<2x16xf32>
    %c0_11 = arith.constant 0 : index
    %c112 = arith.constant 112 : index
    %33 = vector.load %arg3[%c0_11, %c112] : memref<2x128xf32, #tpu.memory_space<vmem>>, vector<2x16xf32>
    tpu.vector_store %arg3[%c0_11, %c112], %32 {strides = array<i32>} : memref<2x128xf32, #tpu.memory_space<vmem>>, vector<2x16xf32>,
    return
  }
  func.func @transform_0(%arg0: i32) -> (i32, i32) {
    %c0_i32 = arith.constant 0 : i32
    %c0_i32_0 = arith.constant 0 : i32
    return %arg0, %c0_i32 : i32, i32
  }
  func.func @transform_1(%arg0: i32) -> (i32, i32) {
    %c0_i32 = arith.constant 0 : i32
    %c0_i32_0 = arith.constant 0 : i32
    %c0_i32_1 = arith.constant 0 : i32
    return %c0_i32, %c0_i32_0 : i32, i32
  }
  func.func @transform_2(%arg0: i32) -> (i32, i32) {
    %c0_i32 = arith.constant 0 : i32
    %c0_i32_0 = arith.constant 0 : i32
    return %arg0, %c0_i32 : i32, i32
  }
}

</mosaic_0001>

<llo_original>
// kernel: tpu_custom_call.1
$region0: #{tpu_custom_call.1}
  #allocation0 [shape = 'u32[]', space=smem, size = 0x4, offset = 0x4, fixed_abs, tag = 'smem constant byte address 0x4 - core index']
  #allocation1 [shape = 'u32[144,128]{1,0:T(1,128)}', space=vmem, size = 0x12000, scoped, tag = 'internal scratch']
  %s0 = inlined_call_operand.hbm [shape: f32[2,4], index: 0, kind: input, shape index: {}]
  %s1 = inlined_call_operand.vmem [shape: f32[1,16], index: 1, kind: input, shape index: {}]
  %s2 = inlined_call_operand.hbm [shape: f32[2,128], index: 2, kind: output, shape index: {}]
  %s3 = sld [smem:[#allocation0]]
  $region22: #{tpu_custom_call.1} parent=0
    _
  %s5 = ssub.s32 1, %s3
  %s6 = scalar_select 0, %s5, %s3
  $region1: #{tpu_custom_call.1} parent=0
    #allocation2 [shape = 'u8[1024]{0}', space=vmem, size = 0x400, scoped, tag = 'input window, operand 0, single buffered']
    #allocation3 [shape = 's32[1]{0}', space=sflag, size = 0x4, scoped, tag = 'scoped memory for tpu_custom_call.1']
    #allocation4 [shape = 's32[1]{0}', space=sflag, size = 0x4, scoped, tag = 'scoped memory for tpu_custom_call.1']
    #allocation5 [shape = 'u8[1024]{0}', space=vmem, size = 0x400, scoped, tag = 'output window, operand 0, single buffered']
    %7 = vsyncpa [#allocation3], 0
    %8 = vsyncpa [#allocation4], 0
    // Predicated region
    $region2: #{tpu_custom_call.1} parent=1 // pred_check
      _
    $region3: #{tpu_custom_call.1} parent=1 // pred_check_branch
      %10 = sbr.rel (0) target = $region5
    $region4: #{tpu_custom_call.1} parent=1 // pred_region
      %s12 = ssub.s32 32, 32
      %13 = vsyncadd [#allocation3], %s12
      %s15 = sshll.u32 [#allocation2], 4
      %s16 = int_to_ptr.vmem [resolvable:$true] %s15
      %18 = dma.hbm_to_vmem [thread:$0]  %s0, 32, %s16, [#allocation3]
    $region5: #{tpu_custom_call.1} parent=1 // pred_fallthru
      _
    // Predicated region
    $region6: #{tpu_custom_call.1} parent=1 // pred_check
      _
    $region7: #{tpu_custom_call.1} parent=1 // pred_check_branch
      %20 = sbr.rel (0) target = $region9
    $region8: #{tpu_custom_call.1} parent=1 // pred_region
      _
    $region9: #{tpu_custom_call.1} parent=1 // pred_fallthru
      _
    // Predicated region
    $region10: #{tpu_custom_call.1} parent=1 // pred_check
      _
    $region11: #{tpu_custom_call.1} parent=1 // pred_check_branch
      %22 = sbr.rel (0) target = $region13
    $region12: #{tpu_custom_call.1} parent=1 // pred_region
      %23 = dma.done [#allocation3], 32
    $region13: #{tpu_custom_call.1} parent=1 // pred_fallthru
      _
    %v24 = vld [vmem:[#allocation2] sm:$0x3]
    %v25 = vld [vmem:[%s1] sm:$0x1]
    %27 = vset.pattern.permute.xlu0 0
    %28 = vperm.xlu0 %27, %v24
    %v29 = vpop.permute.xlu0 %28
    %v32 = vlaneseq
    %v33 = vshrl.u32 %v32, 7
    %v34 = vsub.s32 0, %v33
    %v35 = vrot.slane %v25, %v34
    %v37 = vmul.f32 %v29, %v35
    %v38 = vand.u32 2147483647, %v37
    %vm39 = vcmp.le.f32.partialorder %v38, 0.7853982
    %vm40 = vcmp.lt.s32.totalorder %v37, 0
    %v41 = vand.u32 %v37, 2139095040
    %v42 = vshrl.u32 %v41, 23
    %v43 = vsub.s32 %v42, 127
    %v44 = vand.u32 2147483647, %v37
    %v45 = vand.u32 %v44, 8388607
    %v46 = vor.u32 %v45, 8388608
    %v47 = vsub.s32 0, %v46
    %v48 = vadd.s32 %v43, 1
    %vm49 = vcmp.gt.s32.totalorder %v48, 0
    %v50 = vsel %vm49, %v48, 0
    %v51 = vshrl.u32 %v50, 5
    %v52 = vand.u32 %v50, 31
    %v53 = vsub.s32 32, %v52
    %v54 = vshrl.u32 683565275, %v53
    %v55 = vshll.u32 683565275, %v52
    %v56 = vshrl.u32 2475754826, %v53
    %v57 = vor.u32 %v55, %v56
    %v58 = vshll.u32 2475754826, %v52
    %v59 = vshrl.u32 2131351028, %v53
    %v60 = vor.u32 %v58, %v59
    %v61 = vshll.u32 2131351028, %v52
    %v62 = vshrl.u32 2102212464, %v53
    %v63 = vor.u32 %v61, %v62
    %v64 = vshll.u32 2102212464, %v52
    %v65 = vshrl.u32 920167782, %v53
    %v66 = vor.u32 %v64, %v65
    %v67 = vshll.u32 920167782, %v52
    %v68 = vshrl.u32 1326507024, %v53
    %v69 = vor.u32 %v67, %v68
    %vm70 = vcmp.lt.s32.totalorder %v51, 1
    %vm71 = vcmp.lt.s32.totalorder %v51, 2
    %vm72 = vcmp.lt.s32.totalorder %v51, 3
    %vm73 = vcmp.lt.s32.totalorder %v51, 4
    %v74 = vsel %vm70, %v54, %v57
    %v75 = vsel %vm73, %v63, 2102212464
    %v76 = vsel %vm72, %v60, %v75
    %v77 = vsel %vm71, %v74, %v76
    %v78 = vsel %vm70, %v57, %v60
    %v79 = vsel %vm73, %v66, 920167782
    %v80 = vsel %vm72, %v63, %v79
    %v81 = vsel %vm71, %v78, %v80
    %v82 = vsel %vm70, %v60, %v63
    %v83 = vsel %vm73, %v69, 1326507024
    %v84 = vsel %vm72, %v66, %v83
    %v85 = vsel %vm71, %v82, %v84
    %v86 = vshll.u32 %v46, 8
    %v87 = vmul.u32.u64.compose %v86, %v85
    %v88 = vextract.low.u32 %v87
    %v89 = vextract.high.u32 %v87
    %v90 = vmul.u32.u64.compose %v86, %v81
    %v91 = vextract.low.u32 %v90
    %v92 = vextract.high.u32 %v90
    %v93 = vmul.u32 %v86, %v77
    %v94 = vadd.s32 %v89, %v91
    %vm95 = vc.u32 %v89, %v91
    %v96 = vadd.s32 %v92, 1
    %v97 = vsel %vm95, %v96, %v92
    %v98 = vadd.s32 %v93, %v97
    %v99 = vadd.s32 %v98, 536870912
    %v100 = vshrl.u32 %v99, 30
    %v101 = vshll.u32 %v100, 30
    %v102 = vsub.s32 %v98, %v101
    %vm103 = vcmp.lt.s32.totalorder %v102, 0
    %v104 = vsub.s32 0, %v102
    %v105 = vsel %vm103, %v104, %v102
    %v106 = vclz %v105
    %v107 = vsub.s32 %v106, 2
    %vm108 = vcmp.gt.s32.totalorder 0, %v107
    %v109 = vsel %vm108, 0, %v107
    %v110 = vsub.s32 32, %v109
    %v111 = vshll.u32 %v102, %v109
    %v112 = vshrl.u32 %v94, %v110
    %v113 = vor.u32 %v111, %v112
    %v114 = vsub.s32 4294967266, %v109
    %v115 = vadd.s32 %v114, 127
    %v116 = vshll.u32 %v115, 23
    %v117 = vor.u32 4788187, %v116
    %v118 = vand.u32 2147483647, %v117
    %v120 = vcvt.s32.f32 %v113
    %v121 = vmul.f32 %v120, %v118
    %v122 = vxor.u32 %v121, 2147483648
    %v123 = vsel %vm40, %v122, %v121
    %v124 = vsub.s32 4, %v100
    %v125 = vsel %vm40, %v124, %v100
    %v126 = vsel %vm39, %v37, %v123
    %v127 = vsel %vm39, 0, %v125
    %v128 = vcosq.f32.pop %v126
    %v129 = vsinq.f32.pop %v126
    %vm130 = vweird.f32 %v37
    %v131 = vand.u32 %v127, 3
    %vm132 = vcmp.lt.s32.totalorder %v131, 2
    %vm133 = vcmp.eq.s32.totalorder %v131, 0
    %v134 = vxor.u32 %v129, 2147483648
    %v135 = vsel %vm133, %v128, %v134
    %vm136 = vcmp.eq.s32.totalorder %v131, 2
    %v137 = vxor.u32 %v128, 2147483648
    %v138 = vsel %vm136, %v137, %v129
    %v139 = vsel %vm132, %v135, %v138
    %v140 = vsel %vm130, nan, %v139
    %vm141 = vcmask 123904
    %142 = vst.msk [vmem:[#allocation5] sm:$0x3] %vm141, %v140
    %v143 = vand.u32 2147483647, %v37
    %vm144 = vcmp.le.f32.partialorder %v143, 0.7853982
    %vm145 = vcmp.lt.s32.totalorder %v37, 0
    %v146 = vand.u32 %v37, 2139095040
    %v147 = vshrl.u32 %v146, 23
    %v148 = vsub.s32 %v147, 127
    %v149 = vand.u32 2147483647, %v37
    %v150 = vand.u32 %v149, 8388607
    %v151 = vor.u32 %v150, 8388608
    %v152 = vsub.s32 0, %v151
    %v153 = vadd.s32 %v148, 1
    %vm154 = vcmp.gt.s32.totalorder %v153, 0
    %v155 = vsel %vm154, %v153, 0
    %v156 = vshrl.u32 %v155, 5
    %v157 = vand.u32 %v155, 31
    %v158 = vsub.s32 32, %v157
    %v159 = vshrl.u32 683565275, %v158
    %v160 = vshll.u32 683565275, %v157
    %v161 = vshrl.u32 2475754826, %v158
    %v162 = vor.u32 %v160, %v161
    %v163 = vshll.u32 2475754826, %v157
    %v164 = vshrl.u32 2131351028, %v158
    %v165 = vor.u32 %v163, %v164
    %v166 = vshll.u32 2131351028, %v157
    %v167 = vshrl.u32 2102212464, %v158
    %v168 = vor.u32 %v166, %v167
    %v169 = vshll.u32 2102212464, %v157
    %v170 = vshrl.u32 920167782, %v158
    %v171 = vor.u32 %v169, %v170
    %v172 = vshll.u32 920167782, %v157
    %v173 = vshrl.u32 1326507024, %v158
    %v174 = vor.u32 %v172, %v173
    %vm175 = vcmp.lt.s32.totalorder %v156, 1
    %vm176 = vcmp.lt.s32.totalorder %v156, 2
    %vm177 = vcmp.lt.s32.totalorder %v156, 3
    %vm178 = vcmp.lt.s32.totalorder %v156, 4
    %v179 = vsel %vm175, %v159, %v162
    %v180 = vsel %vm178, %v168, 2102212464
    %v181 = vsel %vm177, %v165, %v180
    %v182 = vsel %vm176, %v179, %v181
    %v183 = vsel %vm175, %v162, %v165
    %v184 = vsel %vm178, %v171, 920167782
    %v185 = vsel %vm177, %v168, %v184
    %v186 = vsel %vm176, %v183, %v185
    %v187 = vsel %vm175, %v165, %v168
    %v188 = vsel %vm178, %v174, 1326507024
    %v189 = vsel %vm177, %v171, %v188
    %v190 = vsel %vm176, %v187, %v189
    %v191 = vshll.u32 %v151, 8
    %v192 = vmul.u32.u64.compose %v191, %v190
    %v193 = vextract.low.u32 %v192
    %v194 = vextract.high.u32 %v192
    %v195 = vmul.u32.u64.compose %v191, %v186
    %v196 = vextract.low.u32 %v195
    %v197 = vextract.high.u32 %v195
    %v198 = vmul.u32 %v191, %v182
    %v199 = vadd.s32 %v194, %v196
    %vm200 = vc.u32 %v194, %v196
    %v201 = vadd.s32 %v197, 1
    %v202 = vsel %vm200, %v201, %v197
    %v203 = vadd.s32 %v198, %v202
    %v204 = vadd.s32 %v203, 536870912
    %v205 = vshrl.u32 %v204, 30
    %v206 = vshll.u32 %v205, 30
    %v207 = vsub.s32 %v203, %v206
    %vm208 = vcmp.lt.s32.totalorder %v207, 0
    %v209 = vsub.s32 0, %v207
    %v210 = vsel %vm208, %v209, %v207
    %v211 = vclz %v210
    %v212 = vsub.s32 %v211, 2
    %vm213 = vcmp.gt.s32.totalorder 0, %v212
    %v214 = vsel %vm213, 0, %v212
    %v215 = vsub.s32 32, %v214
    %v216 = vshll.u32 %v207, %v214
    %v217 = vshrl.u32 %v199, %v215
    %v218 = vor.u32 %v216, %v217
    %v219 = vsub.s32 4294967266, %v214
    %v220 = vadd.s32 %v219, 127
    %v221 = vshll.u32 %v220, 23
    %v222 = vor.u32 4788187, %v221
    %v223 = vand.u32 2147483647, %v222
    %v225 = vcvt.s32.f32 %v218
    %v226 = vmul.f32 %v225, %v223
    %v227 = vxor.u32 %v226, 2147483648
    %v228 = vsel %vm145, %v227, %v226
    %v229 = vsub.s32 4, %v205
    %v230 = vsel %vm145, %v229, %v205
    %v231 = vsel %vm144, %v37, %v228
    %v232 = vsel %vm144, 0, %v230
    %v233 = vcosq.f32.pop %v231
    %v234 = vsinq.f32.pop %v231
    %vm235 = vweird.f32 %v37
    %v236 = vadd.s32 %v232, 3
    %v237 = vand.u32 %v236, 3
    %vm238 = vcmp.lt.s32.totalorder %v237, 2
    %vm239 = vcmp.eq.s32.totalorder %v237, 0
    %v240 = vxor.u32 %v234, 2147483648
    %v241 = vsel %vm239, %v233, %v240
    %vm242 = vcmp.eq.s32.totalorder %v237, 2
    %v243 = vxor.u32 %v233, 2147483648
    %v244 = vsel %vm242, %v243, %v234
    %v245 = vsel %vm238, %v241, %v244
    %v246 = vsel %vm235, nan, %v245
    %248 = vrot.lane.b32.xlu0 %v246, 16
    %v249 = vpop.permute.xlu0 %248
    %vm251 = vcmask 255104
    %252 = vst.msk [vmem:[#allocation5] sm:$0x3] %vm251, %v249
    %253 = vset.pattern.permute.xlu0 1
    %254 = vperm.xlu0 %253, %v24
    %v255 = vpop.permute.xlu0 %254
    %v257 = vmul.f32 %v255, %v35
    %v258 = vand.u32 2147483647, %v257
    %vm259 = vcmp.le.f32.partialorder %v258, 0.7853982
    %vm260 = vcmp.lt.s32.totalorder %v257, 0
    %v261 = vand.u32 %v257, 2139095040
    %v262 = vshrl.u32 %v261, 23
    %v263 = vsub.s32 %v262, 127
    %v264 = vand.u32 2147483647, %v257
    %v265 = vand.u32 %v264, 8388607
    %v266 = vor.u32 %v265, 8388608
    %v267 = vsub.s32 0, %v266
    %v268 = vadd.s32 %v263, 1
    %vm269 = vcmp.gt.s32.totalorder %v268, 0
    %v270 = vsel %vm269, %v268, 0
    %v271 = vshrl.u32 %v270, 5
    %v272 = vand.u32 %v270, 31
    %v273 = vsub.s32 32, %v272
    %v274 = vshrl.u32 683565275, %v273
    %v275 = vshll.u32 683565275, %v272
    %v276 = vshrl.u32 2475754826, %v273
    %v277 = vor.u32 %v275, %v276
    %v278 = vshll.u32 2475754826, %v272
    %v279 = vshrl.u32 2131351028, %v273
    %v280 = vor.u32 %v278, %v279
    %v281 = vshll.u32 2131351028, %v272
    %v282 = vshrl.u32 2102212464, %v273
    %v283 = vor.u32 %v281, %v282
    %v284 = vshll.u32 2102212464, %v272
    %v285 = vshrl.u32 920167782, %v273
    %v286 = vor.u32 %v284, %v285
    %v287 = vshll.u32 920167782, %v272
    %v288 = vshrl.u32 1326507024, %v273
    %v289 = vor.u32 %v287, %v288
    %vm290 = vcmp.lt.s32.totalorder %v271, 1
    %vm291 = vcmp.lt.s32.totalorder %v271, 2
    %vm292 = vcmp.lt.s32.totalorder %v271, 3
    %vm293 = vcmp.lt.s32.totalorder %v271, 4
    %v294 = vsel %vm290, %v274, %v277
    %v295 = vsel %vm293, %v283, 2102212464
    %v296 = vsel %vm292, %v280, %v295
    %v297 = vsel %vm291, %v294, %v296
    %v298 = vsel %vm290, %v277, %v280
    %v299 = vsel %vm293, %v286, 920167782
    %v300 = vsel %vm292, %v283, %v299
    %v301 = vsel %vm291, %v298, %v300
    %v302 = vsel %vm290, %v280, %v283
    %v303 = vsel %vm293, %v289, 1326507024
    %v304 = vsel %vm292, %v286, %v303
    %v305 = vsel %vm291, %v302, %v304
    %v306 = vshll.u32 %v266, 8
    %v307 = vmul.u32.u64.compose %v306, %v305
    %v308 = vextract.low.u32 %v307
    %v309 = vextract.high.u32 %v307
    %v310 = vmul.u32.u64.compose %v306, %v301
    %v311 = vextract.low.u32 %v310
    %v312 = vextract.high.u32 %v310
    %v313 = vmul.u32 %v306, %v297
    %v314 = vadd.s32 %v309, %v311
    %vm315 = vc.u32 %v309, %v311
    %v316 = vadd.s32 %v312, 1
    %v317 = vsel %vm315, %v316, %v312
    %v318 = vadd.s32 %v313, %v317
    %v319 = vadd.s32 %v318, 536870912
    %v320 = vshrl.u32 %v319, 30
    %v321 = vshll.u32 %v320, 30
    %v322 = vsub.s32 %v318, %v321
    %vm323 = vcmp.lt.s32.totalorder %v322, 0
    %v324 = vsub.s32 0, %v322
    %v325 = vsel %vm323, %v324, %v322
    %v326 = vclz %v325
    %v327 = vsub.s32 %v326, 2
    %vm328 = vcmp.gt.s32.totalorder 0, %v327
    %v329 = vsel %vm328, 0, %v327
    %v330 = vsub.s32 32, %v329
    %v331 = vshll.u32 %v322, %v329
    %v332 = vshrl.u32 %v314, %v330
    %v333 = vor.u32 %v331, %v332
    %v334 = vsub.s32 4294967266, %v329
    %v335 = vadd.s32 %v334, 127
    %v336 = vshll.u32 %v335, 23
    %v337 = vor.u32 4788187, %v336
    %v338 = vand.u32 2147483647, %v337
    %v340 = vcvt.s32.f32 %v333
    %v341 = vmul.f32 %v340, %v338
    %v342 = vxor.u32 %v341, 2147483648
    %v343 = vsel %vm260, %v342, %v341
    %v344 = vsub.s32 4, %v320
    %v345 = vsel %vm260, %v344, %v320
    %v346 = vsel %vm259, %v257, %v343
    %v347 = vsel %vm259, 0, %v345
    %v348 = vcosq.f32.pop %v346
    %v349 = vsinq.f32.pop %v346
    %vm350 = vweird.f32 %v257
    %v351 = vand.u32 %v347, 3
    %vm352 = vcmp.lt.s32.totalorder %v351, 2
    %vm353 = vcmp.eq.s32.totalorder %v351, 0
    %v354 = vxor.u32 %v349, 2147483648
    %v355 = vsel %vm353, %v348, %v354
    %vm356 = vcmp.eq.s32.totalorder %v351, 2
    %v357 = vxor.u32 %v348, 2147483648
    %v358 = vsel %vm356, %v357, %v349
    %v359 = vsel %vm352, %v355, %v358
    %v360 = vsel %vm350, nan, %v359
    %362 = vrot.lane.b32.xlu0 %v360, 32
    %v363 = vpop.permute.xlu0 %362
    %vm365 = vcmask 386304
    %366 = vst.msk [vmem:[#allocation5] sm:$0x3] %vm365, %v363
    %v367 = vand.u32 2147483647, %v257
    %vm368 = vcmp.le.f32.partialorder %v367, 0.7853982
    %vm369 = vcmp.lt.s32.totalorder %v257, 0
    %v370 = vand.u32 %v257, 2139095040
    %v371 = vshrl.u32 %v370, 23
    %v372 = vsub.s32 %v371, 127
    %v373 = vand.u32 2147483647, %v257
    %v374 = vand.u32 %v373, 8388607
    %v375 = vor.u32 %v374, 8388608
    %v376 = vsub.s32 0, %v375
    %v377 = vadd.s32 %v372, 1
    %vm378 = vcmp.gt.s32.totalorder %v377, 0
    %v379 = vsel %vm378, %v377, 0
    %v380 = vshrl.u32 %v379, 5
    %v381 = vand.u32 %v379, 31
    %v382 = vsub.s32 32, %v381
    %v383 = vshrl.u32 683565275, %v382
    %v384 = vshll.u32 683565275, %v381
    %v385 = vshrl.u32 2475754826, %v382
    %v386 = vor.u32 %v384, %v385
    %v387 = vshll.u32 2475754826, %v381
    %v388 = vshrl.u32 2131351028, %v382
    %v389 = vor.u32 %v387, %v388
    %v390 = vshll.u32 2131351028, %v381
    %v391 = vshrl.u32 2102212464, %v382
    %v392 = vor.u32 %v390, %v391
    %v393 = vshll.u32 2102212464, %v381
    %v394 = vshrl.u32 920167782, %v382
    %v395 = vor.u32 %v393, %v394
    %v396 = vshll.u32 920167782, %v381
    %v397 = vshrl.u32 1326507024, %v382
    %v398 = vor.u32 %v396, %v397
    %vm399 = vcmp.lt.s32.totalorder %v380, 1
    %vm400 = vcmp.lt.s32.totalorder %v380, 2
    %vm401 = vcmp.lt.s32.totalorder %v380, 3
    %vm402 = vcmp.lt.s32.totalorder %v380, 4
    %v403 = vsel %vm399, %v383, %v386
    %v404 = vsel %vm402, %v392, 2102212464
    %v405 = vsel %vm401, %v389, %v404
    %v406 = vsel %vm400, %v403, %v405
    %v407 = vsel %vm399, %v386, %v389
    %v408 = vsel %vm402, %v395, 920167782
    %v409 = vsel %vm401, %v392, %v408
    %v410 = vsel %vm400, %v407, %v409
    %v411 = vsel %vm399, %v389, %v392
    %v412 = vsel %vm402, %v398, 1326507024
    %v413 = vsel %vm401, %v395, %v412
    %v414 = vsel %vm400, %v411, %v413
    %v415 = vshll.u32 %v375, 8
    %v416 = vmul.u32.u64.compose %v415, %v414
    %v417 = vextract.low.u32 %v416
    %v418 = vextract.high.u32 %v416
    %v419 = vmul.u32.u64.compose %v415, %v410
    %v420 = vextract.low.u32 %v419
    %v421 = vextract.high.u32 %v419
    %v422 = vmul.u32 %v415, %v406
    %v423 = vadd.s32 %v418, %v420
    %vm424 = vc.u32 %v418, %v420
    %v425 = vadd.s32 %v421, 1
    %v426 = vsel %vm424, %v425, %v421
    %v427 = vadd.s32 %v422, %v426
    %v428 = vadd.s32 %v427, 536870912
    %v429 = vshrl.u32 %v428, 30
    %v430 = vshll.u32 %v429, 30
    %v431 = vsub.s32 %v427, %v430
    %vm432 = vcmp.lt.s32.totalorder %v431, 0
    %v433 = vsub.s32 0, %v431
    %v434 = vsel %vm432, %v433, %v431
    %v435 = vclz %v434
    %v436 = vsub.s32 %v435, 2
    %vm437 = vcmp.gt.s32.totalorder 0, %v436
    %v438 = vsel %vm437, 0, %v436
    %v439 = vsub.s32 32, %v438
    %v440 = vshll.u32 %v431, %v438
    %v441 = vshrl.u32 %v423, %v439
    %v442 = vor.u32 %v440, %v441
    %v443 = vsub.s32 4294967266, %v438
    %v444 = vadd.s32 %v443, 127
    %v445 = vshll.u32 %v444, 23
    %v446 = vor.u32 4788187, %v445
    %v447 = vand.u32 2147483647, %v446
    %v449 = vcvt.s32.f32 %v442
    %v450 = vmul.f32 %v449, %v447
    %v451 = vxor.u32 %v450, 2147483648
    %v452 = vsel %vm369, %v451, %v450
    %v453 = vsub.s32 4, %v429
    %v454 = vsel %vm369, %v453, %v429
    %v455 = vsel %vm368, %v257, %v452
    %v456 = vsel %vm368, 0, %v454
    %v457 = vcosq.f32.pop %v455
    %v458 = vsinq.f32.pop %v455
    %vm459 = vweird.f32 %v257
    %v460 = vadd.s32 %v456, 3
    %v461 = vand.u32 %v460, 3
    %vm462 = vcmp.lt.s32.totalorder %v461, 2
    %vm463 = vcmp.eq.s32.totalorder %v461, 0
    %v464 = vxor.u32 %v458, 2147483648
    %v465 = vsel %vm463, %v457, %v464
    %vm466 = vcmp.eq.s32.totalorder %v461, 2
    %v467 = vxor.u32 %v457, 2147483648
    %v468 = vsel %vm466, %v467, %v458
    %v469 = vsel %vm462, %v465, %v468
    %v470 = vsel %vm459, nan, %v469
    %472 = vrot.lane.b32.xlu0 %v470, 48
    %v473 = vpop.permute.xlu0 %472
    %vm475 = vcmask 517504
    %476 = vst.msk [vmem:[#allocation5] sm:$0x3] %vm475, %v473
    %477 = vset.pattern.permute.xlu0 2
    %478 = vperm.xlu0 %477, %v24
    %v479 = vpop.permute.xlu0 %478
    %v481 = vmul.f32 %v479, %v35
    %v482 = vand.u32 2147483647, %v481
    %vm483 = vcmp.le.f32.partialorder %v482, 0.7853982
    %vm484 = vcmp.lt.s32.totalorder %v481, 0
    %v485 = vand.u32 %v481, 2139095040
    %v486 = vshrl.u32 %v485, 23
    %v487 = vsub.s32 %v486, 127
    %v488 = vand.u32 2147483647, %v481
    %v489 = vand.u32 %v488, 8388607
    %v490 = vor.u32 %v489, 8388608
    %v491 = vsub.s32 0, %v490
    %v492 = vadd.s32 %v487, 1
    %vm493 = vcmp.gt.s32.totalorder %v492, 0
    %v494 = vsel %vm493, %v492, 0
    %v495 = vshrl.u32 %v494, 5
    %v496 = vand.u32 %v494, 31
    %v497 = vsub.s32 32, %v496
    %v498 = vshrl.u32 683565275, %v497
    %v499 = vshll.u32 683565275, %v496
    %v500 = vshrl.u32 2475754826, %v497
    %v501 = vor.u32 %v499, %v500
    %v502 = vshll.u32 2475754826, %v496
    %v503 = vshrl.u32 2131351028, %v497
    %v504 = vor.u32 %v502, %v503
    %v505 = vshll.u32 2131351028, %v496
    %v506 = vshrl.u32 2102212464, %v497
    %v507 = vor.u32 %v505, %v506
    %v508 = vshll.u32 2102212464, %v496
    %v509 = vshrl.u32 920167782, %v497
    %v510 = vor.u32 %v508, %v509
    %v511 = vshll.u32 920167782, %v496
    %v512 = vshrl.u32 1326507024, %v497
    %v513 = vor.u32 %v511, %v512
    %vm514 = vcmp.lt.s32.totalorder %v495, 1
    %vm515 = vcmp.lt.s32.totalorder %v495, 2
    %vm516 = vcmp.lt.s32.totalorder %v495, 3
    %vm517 = vcmp.lt.s32.totalorder %v495, 4
    %v518 = vsel %vm514, %v498, %v501
    %v519 = vsel %vm517, %v507, 2102212464
    %v520 = vsel %vm516, %v504, %v519
    %v521 = vsel %vm515, %v518, %v520
    %v522 = vsel %vm514, %v501, %v504
    %v523 = vsel %vm517, %v510, 920167782
    %v524 = vsel %vm516, %v507, %v523
    %v525 = vsel %vm515, %v522, %v524
    %v526 = vsel %vm514, %v504, %v507
    %v527 = vsel %vm517, %v513, 1326507024
    %v528 = vsel %vm516, %v510, %v527
    %v529 = vsel %vm515, %v526, %v528
    %v530 = vshll.u32 %v490, 8
    %v531 = vmul.u32.u64.compose %v530, %v529
    %v532 = vextract.low.u32 %v531
    %v533 = vextract.high.u32 %v531
    %v534 = vmul.u32.u64.compose %v530, %v525
    %v535 = vextract.low.u32 %v534
    %v536 = vextract.high.u32 %v534
    %v537 = vmul.u32 %v530, %v521
    %v538 = vadd.s32 %v533, %v535
    %vm539 = vc.u32 %v533, %v535
    %v540 = vadd.s32 %v536, 1
    %v541 = vsel %vm539, %v540, %v536
    %v542 = vadd.s32 %v537, %v541
    %v543 = vadd.s32 %v542, 536870912
    %v544 = vshrl.u32 %v543, 30
    %v545 = vshll.u32 %v544, 30
    %v546 = vsub.s32 %v542, %v545
    %vm547 = vcmp.lt.s32.totalorder %v546, 0
    %v548 = vsub.s32 0, %v546
    %v549 = vsel %vm547, %v548, %v546
    %v550 = vclz %v549
    %v551 = vsub.s32 %v550, 2
    %vm552 = vcmp.gt.s32.totalorder 0, %v551
    %v553 = vsel %vm552, 0, %v551
    %v554 = vsub.s32 32, %v553
    %v555 = vshll.u32 %v546, %v553
    %v556 = vshrl.u32 %v538, %v554
    %v557 = vor.u32 %v555, %v556
    %v558 = vsub.s32 4294967266, %v553
    %v559 = vadd.s32 %v558, 127
    %v560 = vshll.u32 %v559, 23
    %v561 = vor.u32 4788187, %v560
    %v562 = vand.u32 2147483647, %v561
    %v564 = vcvt.s32.f32 %v557
    %v565 = vmul.f32 %v564, %v562
    %v566 = vxor.u32 %v565, 2147483648
    %v567 = vsel %vm484, %v566, %v565
    %v568 = vsub.s32 4, %v544
    %v569 = vsel %vm484, %v568, %v544
    %v570 = vsel %vm483, %v481, %v567
    %v571 = vsel %vm483, 0, %v569
    %v572 = vcosq.f32.pop %v570
    %v573 = vsinq.f32.pop %v570
    %vm574 = vweird.f32 %v481
    %v575 = vand.u32 %v571, 3
    %vm576 = vcmp.lt.s32.totalorder %v575, 2
    %vm577 = vcmp.eq.s32.totalorder %v575, 0
    %v578 = vxor.u32 %v573, 2147483648
    %v579 = vsel %vm577, %v572, %v578
    %vm580 = vcmp.eq.s32.totalorder %v575, 2
    %v581 = vxor.u32 %v572, 2147483648
    %v582 = vsel %vm580, %v581, %v573
    %v583 = vsel %vm576, %v579, %v582
    %v584 = vsel %vm574, nan, %v583
    %586 = vrot.lane.b32.xlu0 %v584, 64
    %v587 = vpop.permute.xlu0 %586
    %vm589 = vcmask 648704
    %590 = vst.msk [vmem:[#allocation5] sm:$0x3] %vm589, %v587
    %v591 = vand.u32 2147483647, %v481
    %vm592 = vcmp.le.f32.partialorder %v591, 0.7853982
    %vm593 = vcmp.lt.s32.totalorder %v481, 0
    %v594 = vand.u32 %v481, 2139095040
    %v595 = vshrl.u32 %v594, 23
    %v596 = vsub.s32 %v595, 127
    %v597 = vand.u32 2147483647, %v481
    %v598 = vand.u32 %v597, 8388607
    %v599 = vor.u32 %v598, 8388608
    %v600 = vsub.s32 0, %v599
    %v601 = vadd.s32 %v596, 1
    %vm602 = vcmp.gt.s32.totalorder %v601, 0
    %v603 = vsel %vm602, %v601, 0
    %v604 = vshrl.u32 %v603, 5
    %v605 = vand.u32 %v603, 31
    %v606 = vsub.s32 32, %v605
    %v607 = vshrl.u32 683565275, %v606
    %v608 = vshll.u32 683565275, %v605
    %v609 = vshrl.u32 2475754826, %v606
    %v610 = vor.u32 %v608, %v609
    %v611 = vshll.u32 2475754826, %v605
    %v612 = vshrl.u32 2131351028, %v606
    %v613 = vor.u32 %v611, %v612
    %v614 = vshll.u32 2131351028, %v605
    %v615 = vshrl.u32 2102212464, %v606
    %v616 = vor.u32 %v614, %v615
    %v617 = vshll.u32 2102212464, %v605
    %v618 = vshrl.u32 920167782, %v606
    %v619 = vor.u32 %v617, %v618
    %v620 = vshll.u32 920167782, %v605
    %v621 = vshrl.u32 1326507024, %v606
    %v622 = vor.u32 %v620, %v621
    %vm623 = vcmp.lt.s32.totalorder %v604, 1
    %vm624 = vcmp.lt.s32.totalorder %v604, 2
    %vm625 = vcmp.lt.s32.totalorder %v604, 3
    %vm626 = vcmp.lt.s32.totalorder %v604, 4
    %v627 = vsel %vm623, %v607, %v610
    %v628 = vsel %vm626, %v616, 2102212464
    %v629 = vsel %vm625, %v613, %v628
    %v630 = vsel %vm624, %v627, %v629
    %v631 = vsel %vm623, %v610, %v613
    %v632 = vsel %vm626, %v619, 920167782
    %v633 = vsel %vm625, %v616, %v632
    %v634 = vsel %vm624, %v631, %v633
    %v635 = vsel %vm623, %v613, %v616
    %v636 = vsel %vm626, %v622, 1326507024
    %v637 = vsel %vm625, %v619, %v636
    %v638 = vsel %vm624, %v635, %v637
    %v639 = vshll.u32 %v599, 8
    %v640 = vmul.u32.u64.compose %v639, %v638
    %v641 = vextract.low.u32 %v640
    %v642 = vextract.high.u32 %v640
    %v643 = vmul.u32.u64.compose %v639, %v634
    %v644 = vextract.low.u32 %v643
    %v645 = vextract.high.u32 %v643
    %v646 = vmul.u32 %v639, %v630
    %v647 = vadd.s32 %v642, %v644
    %vm648 = vc.u32 %v642, %v644
    %v649 = vadd.s32 %v645, 1
    %v650 = vsel %vm648, %v649, %v645
    %v651 = vadd.s32 %v646, %v650
    %v652 = vadd.s32 %v651, 536870912
    %v653 = vshrl.u32 %v652, 30
    %v654 = vshll.u32 %v653, 30
    %v655 = vsub.s32 %v651, %v654
    %vm656 = vcmp.lt.s32.totalorder %v655, 0
    %v657 = vsub.s32 0, %v655
    %v658 = vsel %vm656, %v657, %v655
    %v659 = vclz %v658
    %v660 = vsub.s32 %v659, 2
    %vm661 = vcmp.gt.s32.totalorder 0, %v660
    %v662 = vsel %vm661, 0, %v660
    %v663 = vsub.s32 32, %v662
    %v664 = vshll.u32 %v655, %v662
    %v665 = vshrl.u32 %v647, %v663
    %v666 = vor.u32 %v664, %v665
    %v667 = vsub.s32 4294967266, %v662
    %v668 = vadd.s32 %v667, 127
    %v669 = vshll.u32 %v668, 23
    %v670 = vor.u32 4788187, %v669
    %v671 = vand.u32 2147483647, %v670
    %v673 = vcvt.s32.f32 %v666
    %v674 = vmul.f32 %v673, %v671
    %v675 = vxor.u32 %v674, 2147483648
    %v676 = vsel %vm593, %v675, %v674
    %v677 = vsub.s32 4, %v653
    %v678 = vsel %vm593, %v677, %v653
    %v679 = vsel %vm592, %v481, %v676
    %v680 = vsel %vm592, 0, %v678
    %v681 = vcosq.f32.pop %v679
    %v682 = vsinq.f32.pop %v679
    %vm683 = vweird.f32 %v481
    %v684 = vadd.s32 %v680, 3
    %v685 = vand.u32 %v684, 3
    %vm686 = vcmp.lt.s32.totalorder %v685, 2
    %vm687 = vcmp.eq.s32.totalorder %v685, 0
    %v688 = vxor.u32 %v682, 2147483648
    %v689 = vsel %vm687, %v681, %v688
    %vm690 = vcmp.eq.s32.totalorder %v685, 2
    %v691 = vxor.u32 %v681, 2147483648
    %v692 = vsel %vm690, %v691, %v682
    %v693 = vsel %vm686, %v689, %v692
    %v694 = vsel %vm683, nan, %v693
    %696 = vrot.lane.b32.xlu0 %v694, 80
    %v697 = vpop.permute.xlu0 %696
    %vm699 = vcmask 779904
    %700 = vst.msk [vmem:[#allocation5] sm:$0x3] %vm699, %v697
    %701 = vset.pattern.permute.xlu0 3
    %702 = vperm.xlu0 %701, %v24
    %v703 = vpop.permute.xlu0 %702
    %v705 = vmul.f32 %v703, %v35
    %v706 = vand.u32 2147483647, %v705
    %vm707 = vcmp.le.f32.partialorder %v706, 0.7853982
    %vm708 = vcmp.lt.s32.totalorder %v705, 0
    %v709 = vand.u32 %v705, 2139095040
    %v710 = vshrl.u32 %v709, 23
    %v711 = vsub.s32 %v710, 127
    %v712 = vand.u32 2147483647, %v705
    %v713 = vand.u32 %v712, 8388607
    %v714 = vor.u32 %v713, 8388608
    %v715 = vsub.s32 0, %v714
    %v716 = vadd.s32 %v711, 1
    %vm717 = vcmp.gt.s32.totalorder %v716, 0
    %v718 = vsel %vm717, %v716, 0
    %v719 = vshrl.u32 %v718, 5
    %v720 = vand.u32 %v718, 31
    %v721 = vsub.s32 32, %v720
    %v722 = vshrl.u32 683565275, %v721
    %v723 = vshll.u32 683565275, %v720
    %v724 = vshrl.u32 2475754826, %v721
    %v725 = vor.u32 %v723, %v724
    %v726 = vshll.u32 2475754826, %v720
    %v727 = vshrl.u32 2131351028, %v721
    %v728 = vor.u32 %v726, %v727
    %v729 = vshll.u32 2131351028, %v720
    %v730 = vshrl.u32 2102212464, %v721
    %v731 = vor.u32 %v729, %v730
    %v732 = vshll.u32 2102212464, %v720
    %v733 = vshrl.u32 920167782, %v721
    %v734 = vor.u32 %v732, %v733
    %v735 = vshll.u32 920167782, %v720
    %v736 = vshrl.u32 1326507024, %v721
    %v737 = vor.u32 %v735, %v736
    %vm738 = vcmp.lt.s32.totalorder %v719, 1
    %vm739 = vcmp.lt.s32.totalorder %v719, 2
    %vm740 = vcmp.lt.s32.totalorder %v719, 3
    %vm741 = vcmp.lt.s32.totalorder %v719, 4
    %v742 = vsel %vm738, %v722, %v725
    %v743 = vsel %vm741, %v731, 2102212464
    %v744 = vsel %vm740, %v728, %v743
    %v745 = vsel %vm739, %v742, %v744
    %v746 = vsel %vm738, %v725, %v728
    %v747 = vsel %vm741, %v734, 920167782
    %v748 = vsel %vm740, %v731, %v747
    %v749 = vsel %vm739, %v746, %v748
    %v750 = vsel %vm738, %v728, %v731
    %v751 = vsel %vm741, %v737, 1326507024
    %v752 = vsel %vm740, %v734, %v751
    %v753 = vsel %vm739, %v750, %v752
    %v754 = vshll.u32 %v714, 8
    %v755 = vmul.u32.u64.compose %v754, %v753
    %v756 = vextract.low.u32 %v755
    %v757 = vextract.high.u32 %v755
    %v758 = vmul.u32.u64.compose %v754, %v749
    %v759 = vextract.low.u32 %v758
    %v760 = vextract.high.u32 %v758
    %v761 = vmul.u32 %v754, %v745
    %v762 = vadd.s32 %v757, %v759
    %vm763 = vc.u32 %v757, %v759
    %v764 = vadd.s32 %v760, 1
    %v765 = vsel %vm763, %v764, %v760
    %v766 = vadd.s32 %v761, %v765
    %v767 = vadd.s32 %v766, 536870912
    %v768 = vshrl.u32 %v767, 30
    %v769 = vshll.u32 %v768, 30
    %v770 = vsub.s32 %v766, %v769
    %vm771 = vcmp.lt.s32.totalorder %v770, 0
    %v772 = vsub.s32 0, %v770
    %v773 = vsel %vm771, %v772, %v770
    %v774 = vclz %v773
    %v775 = vsub.s32 %v774, 2
    %vm776 = vcmp.gt.s32.totalorder 0, %v775
    %v777 = vsel %vm776, 0, %v775
    %v778 = vsub.s32 32, %v777
    %v779 = vshll.u32 %v770, %v777
    %v780 = vshrl.u32 %v762, %v778
    %v781 = vor.u32 %v779, %v780
    %v782 = vsub.s32 4294967266, %v777
    %v783 = vadd.s32 %v782, 127
    %v784 = vshll.u32 %v783, 23
    %v785 = vor.u32 4788187, %v784
    %v786 = vand.u32 2147483647, %v785
    %v788 = vcvt.s32.f32 %v781
    %v789 = vmul.f32 %v788, %v786
    %v790 = vxor.u32 %v789, 2147483648
    %v791 = vsel %vm708, %v790, %v789
    %v792 = vsub.s32 4, %v768
    %v793 = vsel %vm708, %v792, %v768
    %v794 = vsel %vm707, %v705, %v791
    %v795 = vsel %vm707, 0, %v793
    %v796 = vcosq.f32.pop %v794
    %v797 = vsinq.f32.pop %v794
    %vm798 = vweird.f32 %v705
    %v799 = vand.u32 %v795, 3
    %vm800 = vcmp.lt.s32.totalorder %v799, 2
    %vm801 = vcmp.eq.s32.totalorder %v799, 0
    %v802 = vxor.u32 %v797, 2147483648
    %v803 = vsel %vm801, %v796, %v802
    %vm804 = vcmp.eq.s32.totalorder %v799, 2
    %v805 = vxor.u32 %v796, 2147483648
    %v806 = vsel %vm804, %v805, %v797
    %v807 = vsel %vm800, %v803, %v806
    %v808 = vsel %vm798, nan, %v807
    %810 = vrot.lane.b32.xlu0 %v808, 96
    %v811 = vpop.permute.xlu0 %810
    %vm813 = vcmask 911104
    %814 = vst.msk [vmem:[#allocation5] sm:$0x3] %vm813, %v811
    %v815 = vand.u32 2147483647, %v705
    %vm816 = vcmp.le.f32.partialorder %v815, 0.7853982
    %vm817 = vcmp.lt.s32.totalorder %v705, 0
    %v818 = vand.u32 %v705, 2139095040
    %v819 = vshrl.u32 %v818, 23
    %v820 = vsub.s32 %v819, 127
    %v821 = vand.u32 2147483647, %v705
    %v822 = vand.u32 %v821, 8388607
    %v823 = vor.u32 %v822, 8388608
    %v824 = vsub.s32 0, %v823
    %v825 = vadd.s32 %v820, 1
    %vm826 = vcmp.gt.s32.totalorder %v825, 0
    %v827 = vsel %vm826, %v825, 0
    %v828 = vshrl.u32 %v827, 5
    %v829 = vand.u32 %v827, 31
    %v830 = vsub.s32 32, %v829
    %v831 = vshrl.u32 683565275, %v830
    %v832 = vshll.u32 683565275, %v829
    %v833 = vshrl.u32 2475754826, %v830
    %v834 = vor.u32 %v832, %v833
    %v835 = vshll.u32 2475754826, %v829
    %v836 = vshrl.u32 2131351028, %v830
    %v837 = vor.u32 %v835, %v836
    %v838 = vshll.u32 2131351028, %v829
    %v839 = vshrl.u32 2102212464, %v830
    %v840 = vor.u32 %v838, %v839
    %v841 = vshll.u32 2102212464, %v829
    %v842 = vshrl.u32 920167782, %v830
    %v843 = vor.u32 %v841, %v842
    %v844 = vshll.u32 920167782, %v829
    %v845 = vshrl.u32 1326507024, %v830
    %v846 = vor.u32 %v844, %v845
    %vm847 = vcmp.lt.s32.totalorder %v828, 1
    %vm848 = vcmp.lt.s32.totalorder %v828, 2
    %vm849 = vcmp.lt.s32.totalorder %v828, 3
    %vm850 = vcmp.lt.s32.totalorder %v828, 4
    %v851 = vsel %vm847, %v831, %v834
    %v852 = vsel %vm850, %v840, 2102212464
    %v853 = vsel %vm849, %v837, %v852
    %v854 = vsel %vm848, %v851, %v853
    %v855 = vsel %vm847, %v834, %v837
    %v856 = vsel %vm850, %v843, 920167782
    %v857 = vsel %vm849, %v840, %v856
    %v858 = vsel %vm848, %v855, %v857
    %v859 = vsel %vm847, %v837, %v840
    %v860 = vsel %vm850, %v846, 1326507024
    %v861 = vsel %vm849, %v843, %v860
    %v862 = vsel %vm848, %v859, %v861
    %v863 = vshll.u32 %v823, 8
    %v864 = vmul.u32.u64.compose %v863, %v862
    %v865 = vextract.low.u32 %v864
    %v866 = vextract.high.u32 %v864
    %v867 = vmul.u32.u64.compose %v863, %v858
    %v868 = vextract.low.u32 %v867
    %v869 = vextract.high.u32 %v867
    %v870 = vmul.u32 %v863, %v854
    %v871 = vadd.s32 %v866, %v868
    %vm872 = vc.u32 %v866, %v868
    %v873 = vadd.s32 %v869, 1
    %v874 = vsel %vm872, %v873, %v869
    %v875 = vadd.s32 %v870, %v874
    %v876 = vadd.s32 %v875, 536870912
    %v877 = vshrl.u32 %v876, 30
    %v878 = vshll.u32 %v877, 30
    %v879 = vsub.s32 %v875, %v878
    %vm880 = vcmp.lt.s32.totalorder %v879, 0
    %v881 = vsub.s32 0, %v879
    %v882 = vsel %vm880, %v881, %v879
    %v883 = vclz %v882
    %v884 = vsub.s32 %v883, 2
    %vm885 = vcmp.gt.s32.totalorder 0, %v884
    %v886 = vsel %vm885, 0, %v884
    %v887 = vsub.s32 32, %v886
    %v888 = vshll.u32 %v879, %v886
    %v889 = vshrl.u32 %v871, %v887
    %v890 = vor.u32 %v888, %v889
    %v891 = vsub.s32 4294967266, %v886
    %v892 = vadd.s32 %v891, 127
    %v893 = vshll.u32 %v892, 23
    %v894 = vor.u32 4788187, %v893
    %v895 = vand.u32 2147483647, %v894
    %v897 = vcvt.s32.f32 %v890
    %v898 = vmul.f32 %v897, %v895
    %v899 = vxor.u32 %v898, 2147483648
    %v900 = vsel %vm817, %v899, %v898
    %v901 = vsub.s32 4, %v877
    %v902 = vsel %vm817, %v901, %v877
    %v903 = vsel %vm816, %v705, %v900
    %v904 = vsel %vm816, 0, %v902
    %v905 = vcosq.f32.pop %v903
    %v906 = vsinq.f32.pop %v903
    %vm907 = vweird.f32 %v705
    %v908 = vadd.s32 %v904, 3
    %v909 = vand.u32 %v908, 3
    %vm910 = vcmp.lt.s32.totalorder %v909, 2
    %vm911 = vcmp.eq.s32.totalorder %v909, 0
    %v912 = vxor.u32 %v906, 2147483648
    %v913 = vsel %vm911, %v905, %v912
    %vm914 = vcmp.eq.s32.totalorder %v909, 2
    %v915 = vxor.u32 %v905, 2147483648
    %v916 = vsel %vm914, %v915, %v906
    %v917 = vsel %vm910, %v913, %v916
    %v918 = vsel %vm907, nan, %v917
    %920 = vrot.lane.b32.xlu0 %v918, 112
    %v921 = vpop.permute.xlu0 %920
    %vm923 = vcmask 1042304
    %924 = vst.msk [vmem:[#allocation5] sm:$0x3] %vm923, %v921
    // Predicated region
    $region14: #{tpu_custom_call.1} parent=1 // pred_check
      _
    $region15: #{tpu_custom_call.1} parent=1 // pred_check_branch
      %926 = sbr.rel (0) target = $region17
    $region16: #{tpu_custom_call.1} parent=1 // pred_region
      %s928 = ssub.s32 32, 32
      %929 = vsyncadd [#allocation4], %s928
      %s931 = sshll.u32 [#allocation5], 4
      %s932 = int_to_ptr.vmem [resolvable:$true] %s931
      %934 = dma.vmem_to_hbm [thread:$0]  %s932, 32, %s2, [#allocation4]
    $region17: #{tpu_custom_call.1} parent=1 // pred_fallthru
      _
    // Predicated region
    $region18: #{tpu_custom_call.1} parent=1 // pred_check
      _
    $region19: #{tpu_custom_call.1} parent=1 // pred_check_branch
      %936 = sbr.rel (0) target = $region21
    $region20: #{tpu_custom_call.1} parent=1 // pred_region
      %937 = dma.done [#allocation4], 32
    $region21: #{tpu_custom_call.1} parent=1 // pred_fallthru
      _
    %938 = vsyncpa [#allocation3], 1
    %939 = vsyncpa [#allocation4], 1

</llo_original>
